<compile_context>
chip_gen: v7x
topology: tpu7x:2x2x1
jax: 0.10.0
libtpu: 0.0.40
codegen_flags: <defaults>
</compile_context>

<pallas_src>
import functools

import jax
import jax.numpy as jnp
from jax.experimental import pallas as pl
from jax.experimental.pallas import tpu as pltpu

_LANE = 128
_VMEM_BUDGET = 12 * 1024 * 1024     # double-buffered budget, < v5e's 16 MiB default
_STEP_TARGET_BYTES = 128 * 1024     # aim for >= ~128 KiB moved per grid step


def _padding_kernel(x_ref, o_ref, *, pad_lo, c_in, c_out):
    # x_ref block: (nb, C_in,  TILE_HW)
    # o_ref block: (nb, C_out, TILE_HW)
    if pad_lo == 0 and c_in == c_out:
        # No channel padding: straight streaming copy.
        o_ref[...] = x_ref[...]
    else:
        # Memset the whole output slab (dense, unmasked stores), then copy the
        # input channels into sublane rows [pad_lo, pad_lo + c_in).
        o_ref[...] = jnp.zeros_like(o_ref)
        o_ref[:, pad_lo:pad_lo + c_in, :] = x_ref[...]


def _pick_tiles(n, c_in, c_out, hw, itemsize):
    """Choose (batch_block, hw_tile) for the slab kernel."""
    # --- HW tile: full extent, or the largest multiple of 128 that keeps the
    # double-buffered (input + output) footprint under the VMEM budget.
    per_hw_elem = 2 * (c_in + c_out) * itemsize   # dbl-buffered bytes / hw elem / batch row
    max_tile = max(_LANE, _VMEM_BUDGET // per_hw_elem)
    if hw <= max_tile:
        tile_hw = hw                               # full-extent block dim: always legal
    else:
        tile_hw = max(_LANE, (max_tile // _LANE) * _LANE)
    n_hw_tiles = -(-hw // tile_hw)

    # --- Batch block: coarsen until each grid step moves a decent chunk, but
    # stay inside the VMEM budget and keep the grid non-degenerate so both
    # v7x TensorCores get work.
    step_bytes = (c_in + c_out) * tile_hw * itemsize        # per batch row
    nb = max(1, min(n, _STEP_TARGET_BYTES // max(step_bytes, 1)))
    nb = min(nb, max(1, _VMEM_BUDGET // (2 * step_bytes)))  # VMEM cap
    if n_hw_tiles == 1 and n >= 2 and nb >= n:
        nb = -(-n // 2)                                     # keep >= 2 grid steps
    return nb, tile_hw, n_hw_tiles


def padding_forward(x_nchw, in_channels, out_channels, stride=1):
    """Pallas equivalent of Padding(in_channels, out_channels, stride)(x)."""
    n, c, h, w = x_nchw.shape
    assert c == in_channels
    assert out_channels >= in_channels, "Padding requires out_channels >= in_channels"

    num_channels = out_channels - in_channels
    pad_lo = num_channels // 2
    c_out = out_channels
    h_out = -(-h // stride)     # ceil(h / stride)  (PyTorch ::stride semantics)
    w_out = -(-w // stride)
    hw = h_out * w_out

    # Spatial subsample outside the kernel (identity for stride == 1), then a
    # free reshape collapsing (H, W) -> H*W so the lane axis is dense.
    x_sub = x_nchw if stride == 1 else x_nchw[:, :, ::stride, ::stride]
    x_flat = x_sub.reshape(n, in_channels, hw)

    itemsize = x_nchw.dtype.itemsize
    nb, tile_hw, n_hw_tiles = _pick_tiles(n, in_channels, c_out, hw, itemsize)
    grid = (pl.cdiv(n, nb), n_hw_tiles)

    kernel = functools.partial(
        _padding_kernel, pad_lo=pad_lo, c_in=in_channels, c_out=c_out)

    out_flat = pl.pallas_call(
        kernel,
        out_shape=jax.ShapeDtypeStruct((n, c_out, hw), x_nchw.dtype),
        grid=grid,
        in_specs=[
            pl.BlockSpec((nb, in_channels, tile_hw), lambda b, t: (b, 0, t)),
        ],
        out_specs=pl.BlockSpec((nb, c_out, tile_hw), lambda b, t: (b, 0, t)),
        compiler_params=pltpu.CompilerParams(
            dimension_semantics=("parallel", "parallel")),
    )(x_flat)

    # free reshape back to NCHW output layout
    return out_flat.reshape(n, c_out, h_out, w_out)


def _reference(x_nchw, in_channels, out_channels, stride):
    num_channels = out_channels - in_channels
    pad_lo = num_channels // 2
    pad_hi = num_channels // 2 + num_channels % 2
    sub = x_nchw[:, :, ::stride, ::stride]
    return jnp.pad(sub, ((0, 0), (pad_lo, pad_hi), (0, 0), (0, 0)))


if __name__ == "__main__":
    key = jax.random.PRNGKey(0)
    x = jax.random.normal(key, (2, 4, 16, 16), dtype=jnp.float32)

    checks = [
        (x, 4, 10, 1),                          # even pad split, stride 1
        (x, 4, 10, 2),                          # stride 2
        (x, 4, 9, 2),                           # odd pad split (2 lo / 3 hi)
        (x.astype(jnp.bfloat16), 4, 10, 2),     # bf16 sublane-packing path
    ]

    ok = True
    for xi, ci, co, s in checks:
        out = jax.block_until_ready(padding_forward(xi, ci, co, stride=s))
        ref = _reference(xi, ci, co, s)
        if out.shape != ref.shape or not bool(jnp.array_equal(out, ref)):
            ok = False
            print(f"MISMATCH: C{ci}->{co} stride={s} dtype={xi.dtype} "
                  f"shapes {out.shape} vs {ref.shape}")

    if ok:
        print("KERNEL_OK")
</pallas_src>

<mosaic_0001>
module attributes {stable_mosaic.version = 11 : i64} {
  func.func @_padding_kernel(%arg0: i32, %arg1: i32, %arg2: memref<1x4x256xf32, #tpu.memory_space<vmem>>, %arg3: memref<1x10x256xf32, #tpu.memory_space<vmem>>) attributes {dimension_semantics = [#tpu.dimension_semantics<parallel>, #tpu.dimension_semantics<parallel>], iteration_bounds = array<i64: 2, 1>, scalar_prefetch = 0 : i64, scratch_operands = 0 : i64, tpu.core_type = #tpu.core_type<tc>, window_params = [{transform_indices = @transform_0, window_bounds = array<i64: 1, 4, 256>}, {transform_indices = @transform_1, window_bounds = array<i64: 1, 10, 256>}]} {
    %cst = arith.constant 0.000000e+00 : f32
    %0 = vector.broadcast %cst : f32 to vector<1x10x256xf32>
    %c0 = arith.constant 0 : index
    %c0_0 = arith.constant 0 : index
    %c0_1 = arith.constant 0 : index
    %1 = vector.load %arg3[%c0, %c0_0, %c0_1] : memref<1x10x256xf32, #tpu.memory_space<vmem>>, vector<1x10x256xf32>
    tpu.vector_store %arg3[%c0, %c0_0, %c0_1], %0 {strides = array<i32>} : memref<1x10x256xf32, #tpu.memory_space<vmem>>, vector<1x10x256xf32>,
    %c0_2 = arith.constant 0 : index
    %c0_3 = arith.constant 0 : index
    %c0_4 = arith.constant 0 : index
    %2 = vector.load %arg2[%c0_2, %c0_3, %c0_4] : memref<1x4x256xf32, #tpu.memory_space<vmem>>, vector<1x4x256xf32>
    %c0_5 = arith.constant 0 : index
    %c3 = arith.constant 3 : index
    %c0_6 = arith.constant 0 : index
    %3 = vector.load %arg3[%c0_5, %c3, %c0_6] : memref<1x10x256xf32, #tpu.memory_space<vmem>>, vector<1x4x256xf32>
    tpu.vector_store %arg3[%c0_5, %c3, %c0_6], %2 {strides = array<i32>} : memref<1x10x256xf32, #tpu.memory_space<vmem>>, vector<1x4x256xf32>,
    return
  }
  func.func @transform_0(%arg0: i32, %arg1: i32) -> (i32, i32, i32) {
    %c0_i32 = arith.constant 0 : i32
    %c0_i32_0 = arith.constant 0 : i32
    return %arg0, %c0_i32, %arg1 : i32, i32, i32
  }
  func.func @transform_1(%arg0: i32, %arg1: i32) -> (i32, i32, i32) {
    %c0_i32 = arith.constant 0 : i32
    %c0_i32_0 = arith.constant 0 : i32
    return %arg0, %c0_i32, %arg1 : i32, i32, i32
  }
}

</mosaic_0001>

<llo_original>
// kernel: tpu_custom_call.1
$region0: #{tpu_custom_call.1}
  #allocation0 [shape = 'u32[]', space=smem, size = 0x4, offset = 0x4, fixed_abs, tag = 'smem constant byte address 0x4 - core index']
  #allocation1 [shape = 'u32[144,128]{1,0:T(1,128)}', space=vmem, size = 0x12000, scoped, tag = 'internal scratch']
  %s0 = inlined_call_operand.hbm [shape: f32[2,4,256], index: 0, kind: input, shape index: {}]
  %s1 = inlined_call_operand.vmem [shape: f32[2,10,256], index: 1, kind: output, shape index: {}]
  %s2 = sld [smem:[#allocation0]]
  $region41: #{tpu_custom_call.1} parent=0
    _
  %s4 = ssub.s32 1, %s2
  %s5 = scalar_select 0, %s4, %s2
  $region1: #{tpu_custom_call.1} parent=0
    #allocation2 [shape = 'u8[8192]{0}', space=vmem, size = 0x2000, scoped, tag = 'input window, operand 0']
    #allocation3 [shape = 's32[2]{0}', space=sflag, size = 0x8, scoped, tag = 'scoped memory for tpu_custom_call.1']
    %6 = vsyncpa [#allocation3], 0
    %s7 = scalar_lea.sflag [#allocation3], 1
    %8 = vsyncpa %s7, 0
    loop: start=0, step=1, limit=4
    $region2: #{tpu_custom_call.1} parent=1 // loop_pre_header
      _
    $region3: #{tpu_custom_call.1} parent=1 // loop_header
      %s10 = sphi 0, %s14
      %p11 = scmp.ge.s32.totalorder %s10, 4
      %s17 = sphi 0, %s29
      %s18 = sphi 0, %s25
      %s19 = sphi 0, %s17
      %s20 = sphi 0, %s18
      %s21 = sphi 0, %s19
      %s22 = sphi 0, %s20
      %s34 = sphi 0, %s36
      %s37 = sphi 0, %s34
      %s38 = sphi 0, %s37
      %s54 = sphi 0, %s38
      %s62 = sphi 0, %s64
      %s65 = sphi 0, %s62
      %s66 = sphi 0, %s65
      %s82 = sphi 0, %s66
    $region4: #{tpu_custom_call.1} parent=1 // loop_header_branch
      %13 = sbr.rel (%p11) target = $region8
    $region5: #{tpu_custom_call.1} parent=1 // loop_body
      %s15 = ssub.s32 %s10, 1
      %s16 = ssub.s32 %s10, 2
      %s23 = sadd.s32 1, %s18
      %p24 = scmp.ge.s32.totalorder %s23, 1
      %s25 = scalar_select %p24, 0, %s23
      %s26 = sadd.s32 1, %s17
      %s27 = scalar_select %p24, %s26, %s17
      %p28 = scmp.ge.s32.totalorder %s27, 2
      %s29 = scalar_select %p28, 0, %s27
      %s30 = ssub.s32 %s17, %s29
      %s31 = ssub.s32 %s18, %s25
      %s32 = sor.u32 %s30, %s31
      %p33 = scmp.eq.s32.totalorder %s32, 0
      %s35 = sadd.s32 %s34, 1
      %s36 = scalar_select %p33, %s34, %s35
      %p39 = pneg %p33
      %p40 = scmp.eq.s32.totalorder %s10, 1
      %p41 = por %p39, %p40
      %p42 = scmp.ne.s32.totalorder %s34, %s37
      %p43 = scmp.eq.s32.totalorder %s10, 0
      %p44 = por %p42, %p43
      %p45 = scmp.ne.s32.totalorder %s34, %s37
      %p46 = scmp.eq.s32.totalorder %s15, 1
      %p47 = por %p45, %p46
      %p48 = scmp.ne.s32.totalorder %s37, %s38
      %p49 = scmp.eq.s32.totalorder %s15, 0
      %p50 = por %p48, %p49
      %p51 = scmp.ne.s32.totalorder %s37, %s38
      %p52 = scmp.eq.s32.totalorder %s16, 1
      %p53 = por %p51, %p52
      %p55 = scmp.ne.s32.totalorder %s38, %s54
      %p56 = scmp.eq.s32.totalorder %s16, 0
      %p57 = por %p55, %p56
      %s58 = ssub.s32 %s17, %s29
      %s59 = ssub.s32 %s18, %s25
      %s60 = sor.u32 %s58, %s59
      %p61 = scmp.eq.s32.totalorder %s60, 0
      %s63 = sadd.s32 %s62, 1
      %s64 = scalar_select %p61, %s62, %s63
      %p67 = pneg %p61
      %p68 = scmp.eq.s32.totalorder %s10, 1
      %p69 = por %p67, %p68
      %p70 = scmp.ne.s32.totalorder %s62, %s65
      %p71 = scmp.eq.s32.totalorder %s10, 0
      %p72 = por %p70, %p71
      %p73 = scmp.ne.s32.totalorder %s62, %s65
      %p74 = scmp.eq.s32.totalorder %s15, 1
      %p75 = por %p73, %p74
      %p76 = scmp.ne.s32.totalorder %s65, %s66
      %p77 = scmp.eq.s32.totalorder %s15, 0
      %p78 = por %p76, %p77
      %p79 = scmp.ne.s32.totalorder %s65, %s66
      %p80 = scmp.eq.s32.totalorder %s16, 1
      %p81 = por %p79, %p80
      %p83 = scmp.ne.s32.totalorder %s66, %s82
      %p84 = scmp.eq.s32.totalorder %s16, 0
      %p85 = por %p83, %p84
      %p86 = scmp.le.s32.totalorder 1, %s10
      %p87 = scmp.lt.s32.totalorder %s10, 3
      %p88 = pnand %p86, %p87
      %p89 = pneg %p88
      // Predicated region
      $region9: #{tpu_custom_call.1} parent=5 // pred_check
        _
      $region10: #{tpu_custom_call.1} parent=5 // pred_check_branch
        %91 = sbr.rel (%p88) target = $region12
      $region11: #{tpu_custom_call.1} parent=5 // pred_region
        %s92 = ssub.s32 %s10, 1
      $region12: #{tpu_custom_call.1} parent=5 // pred_fallthru
        _
      %p93 = scmp.lt.s32.totalorder %s10, 2
      // Predicated region
      $region13: #{tpu_custom_call.1} parent=5 // pred_check
        %p94 = pneg %p93
      $region14: #{tpu_custom_call.1} parent=5 // pred_check_branch
        %96 = sbr.rel (%p94) target = $region16
      $region15: #{tpu_custom_call.1} parent=5 // pred_region
        // Predicated region
        $region17: #{tpu_custom_call.1} parent=15 // pred_check
          %p97 = pneg %p44
        $region18: #{tpu_custom_call.1} parent=15 // pred_check_branch
          %99 = sbr.rel (%p97) target = $region20
        $region19: #{tpu_custom_call.1} parent=15 // pred_region
          %s100 = sand.u32 %s34, 1
          %s101 = scalar_lea.sflag [#allocation3], %s100
          %s102 = sand.u32 %s34, 1
          %s103 = smul.addr %s102, 8
          %s104 = scalar_lea.vmem [#allocation2], %s103
          %s105 = smul.u32 2, %s18
          %s107 = ssub.s32 128, 128
          %108 = vsyncadd %s101, %s107
          %s109 = smul.addr %s17, 2
          %s110 = sadd.s32 %s105, %s109
          %s111 = smul.addr %s110, 64
          %s112 = scalar_lea.hbm %s0, %s111
          %s114 = sshll.u32 %s104, 4
          %s115 = int_to_ptr.vmem [resolvable:$true] %s114
          %117 = dma.hbm_to_vmem [thread:$0]  %s112, 128, %s115, %s101
        $region20: #{tpu_custom_call.1} parent=15 // pred_fallthru
          _
      $region16: #{tpu_custom_call.1} parent=5 // pred_fallthru
        _
      %p118 = scmp.le.s32.totalorder 1, %s10
      %p119 = scmp.lt.s32.totalorder %s10, 3
      %p120 = pnand %p118, %p119
      %p121 = pneg %p120
      // Predicated region
      $region21: #{tpu_custom_call.1} parent=5 // pred_check
        _
      $region22: #{tpu_custom_call.1} parent=5 // pred_check_branch
        %123 = sbr.rel (%p120) target = $region24
      $region23: #{tpu_custom_call.1} parent=5 // pred_region
        %s124 = ssub.s32 %s10, 1
        %s125 = sand.u32 %s37, 1
        %s126 = scalar_lea.sflag [#allocation3], %s125
        %s127 = sand.u32 %s37, 1
        %s128 = smul.addr %s127, 8
        %s129 = scalar_lea.vmem [#allocation2], %s128
        // Predicated region
        $region25: #{tpu_custom_call.1} parent=23 // pred_check
          %p130 = pneg %p50
        $region26: #{tpu_custom_call.1} parent=23 // pred_check_branch
          %132 = sbr.rel (%p130) target = $region28
        $region27: #{tpu_custom_call.1} parent=23 // pred_region
          %133 = dma.done %s126, 128
        $region28: #{tpu_custom_call.1} parent=23 // pred_fallthru
          _
        %s134 = sand.u32 %s37, 1
        %s135 = scalar_lea.sflag [#allocation3], %s134
        %s136 = sand.u32 %s37, 1
        %s137 = smul.addr %s136, 8
        %s138 = scalar_lea.vmem [#allocation2], %s137
        %p139 = pneg %p50
        %p140 = pneg %p47
        %p141 = pneg %p78
        %p142 = pneg %p75
        %s143 = smul.u32 2, %s20
        %p144 = scmp.lt.s32.totalorder %s19, 1
        %s145 = scalar_select %p144, %s19, 1
        %p146 = scmp.lt.s32.totalorder %s143, 1
        %s147 = scalar_select %p146, %s143, 1
        %s148 = smul.addr %s145, 4
        %s149 = sadd.s32 %s147, %s148
        %s150 = smul.addr %s149, 8
        %s151 = scalar_lea.vmem %s1, %s150
        %s152 = smul.u32 2, %s20
        %s153 = smul.u32 2, %s20
        %p154 = scmp.lt.s32.totalorder %s19, 1
        %s155 = scalar_select %p154, %s19, 1
        %p156 = scmp.lt.s32.totalorder %s153, 1
        %s157 = scalar_select %p156, %s153, 1
        %s158 = smul.addr %s155, 4
        %s159 = sadd.s32 %s157, %s158
        %s160 = smul.addr %s159, 8
        %s161 = scalar_lea.vmem %s1, %s160
        %s162 = smul.u32 2, %s20
        %163 = vst [vmem:[%s161] sm:$0xff] 0.0
        %164 = vst [vmem:[%s161 + $0x8] sm:$0xff] 0.0
        %165 = vst [vmem:[%s161 + $0x10] sm:$0x3] 0.0
        %166 = vst [vmem:[%s161 + $0x18] sm:$0x3] 0.0
        %v167 = vld [vmem:[%s129] sm:$0xff]
        %v169 = vcombine.high %v167, %v167
        %v170 = vrot.slane %v167, 5
        %v171 = vrot.slane %v169, 5
        %174 = vst [vmem:[%s161] sm:$0x78] %v170
        %175 = vst [vmem:[%s161 + $0x8] sm:$0x78] %v171
        %s176 = smul.u32 2, %s20
        %p177 = scmp.lt.s32.totalorder %s19, 1
        %s178 = scalar_select %p177, %s19, 1
        %p179 = scmp.lt.s32.totalorder %s176, 1
        %s180 = scalar_select %p179, %s176, 1
        %s181 = smul.addr %s178, 4
        %s182 = sadd.s32 %s180, %s181
        %s183 = smul.addr %s182, 8
        %s184 = scalar_lea.vmem %s1, %s183
        // Predicated region
        $region29: #{tpu_custom_call.1} parent=23 // pred_check
          %p185 = pneg %p75
        $region30: #{tpu_custom_call.1} parent=23 // pred_check_branch
          %187 = sbr.rel (%p185) target = $region32
        $region31: #{tpu_custom_call.1} parent=23 // pred_region
          %s188 = smul.u32 2, %s20
        $region32: #{tpu_custom_call.1} parent=23 // pred_fallthru
          _
      $region24: #{tpu_custom_call.1} parent=5 // pred_fallthru
        _
      %p189 = scmp.le.s32.totalorder 2, %s10
      // Predicated region
      $region33: #{tpu_custom_call.1} parent=5 // pred_check
        %p190 = pneg %p189
      $region34: #{tpu_custom_call.1} parent=5 // pred_check_branch
        %192 = sbr.rel (%p190) target = $region36
      $region35: #{tpu_custom_call.1} parent=5 // pred_region
        %s193 = ssub.s32 %s10, 2
        // Predicated region
        $region37: #{tpu_custom_call.1} parent=35 // pred_check
          %p194 = pneg %p81
        $region38: #{tpu_custom_call.1} parent=35 // pred_check_branch
          %196 = sbr.rel (%p194) target = $region40
        $region39: #{tpu_custom_call.1} parent=35 // pred_region
          %s197 = smul.u32 2, %s22
          %p198 = scmp.lt.s32.totalorder %s21, 1
          %s199 = scalar_select %p198, %s21, 1
          %p200 = scmp.lt.s32.totalorder %s197, 1
          %s201 = scalar_select %p200, %s197, 1
          %s202 = smul.addr %s199, 4
          %s203 = sadd.s32 %s201, %s202
          %s204 = smul.addr %s203, 8
          %s205 = scalar_lea.vmem %s1, %s204
        $region40: #{tpu_custom_call.1} parent=35 // pred_fallthru
          _
      $region36: #{tpu_custom_call.1} parent=5 // pred_fallthru
        _
    $region6: #{tpu_custom_call.1} parent=1 // loop_footer
      %s14 = sadd.s32 1, %s10
    $region7: #{tpu_custom_call.1} parent=1 // loop_footer_branch
      %9 = sbr.rel target = $region3
    $region8: #{tpu_custom_call.1} parent=1 // loop_exit
      _
    %206 = vsyncpa [#allocation3], 1
    %s207 = scalar_lea.sflag [#allocation3], 1
    %208 = vsyncpa %s207, 1

</llo_original>
